<compile_context>
chip_gen: v6e
topology: v6e:2x2x1
jax: 0.10.0
libtpu: 0.0.40
codegen_flags: <defaults>
</compile_context>

<pallas_src>
import jax
import jax.numpy as jnp
from jax.experimental import pallas as pl
from jax.experimental.pallas import tpu as pltpu


_LANES = (1024, 512, 256, 128)        # lane-dense candidates (multiples of 128)
_TARGET_TILE_BYTES = 4 * 1024 * 1024  # ~4 MiB tile of the widest operand
_SMALL_INPUT_BYTES = 128 * 1024       # below this, let XLA fuse the multiply


def _result_dtype(x_dtype):
    # PyTorch: float tensor * python float stays in the tensor dtype;
    # int/bool tensor * python float promotes to the default float (float32).
    if jnp.issubdtype(x_dtype, jnp.floating):
        return x_dtype
    return jnp.float32


def _make_scale_kernel(scale, out_dtype):
    """Elementwise x*scale with `scale` baked in as a constant."""

    def kernel(x_ref, o_ref):
        x = x_ref[...].astype(out_dtype)          # no-op for float inputs
        o_ref[...] = x * jnp.asarray(scale, out_dtype)

    return kernel


def scale_forward(x: jax.Array, scale: float) -> jax.Array:
    """Equivalent of PyTorch `Scale(scale).forward(x)` for arbitrary-shape inputs."""
    orig_shape = x.shape
    out_dtype = _result_dtype(x.dtype)
    total = x.size
    in_bytes = total * jnp.dtype(x.dtype).itemsize

    # Fast path for tiny tensors: launch/pipeline overhead dominates, a fused
    # XLA elementwise is strictly cheaper.
    if total == 0 or in_bytes < _SMALL_INPUT_BYTES:
        return (x.astype(out_dtype) * jnp.asarray(scale, out_dtype)).reshape(orig_shape)

    # Pick the widest lane count that divides the element count exactly so the
    # reshape is free and no pad/slice HBM passes are needed.
    lane = next((l for l in _LANES if total % l == 0), None)
    if lane is None:
        # Rare (size not a multiple of 128): a single fused XLA multiply is one
        # read+write HBM pass, cheaper than pad + kernel + slice (3 passes).
        return (x.astype(out_dtype) * jnp.asarray(scale, out_dtype)).reshape(orig_shape)

    rows = total // lane
    x2d = x.reshape(rows, lane)  # row-major reshape: metadata only, no HBM traffic

    # Byte-targeted tile: ~4 MiB of the widest operand, sublane-aligned.
    itemsize = max(jnp.dtype(x.dtype).itemsize, jnp.dtype(out_dtype).itemsize)
    block_rows = _TARGET_TILE_BYTES // (lane * itemsize)
    block_rows = max(32, (block_rows // 32) * 32)   # multiple of 32: valid for f32/bf16/int8
    block_rows = min(block_rows, rows)              # full extent for small row counts
    grid = (pl.cdiv(rows, block_rows),)             # partial last block is masked by Pallas

    out2d = pl.pallas_call(
        _make_scale_kernel(scale, out_dtype),
        out_shape=jax.ShapeDtypeStruct((rows, lane), out_dtype),
        grid_spec=pl.GridSpec(
            grid=grid,
            in_specs=[pl.BlockSpec((block_rows, lane), lambda i: (i, 0))],
            out_specs=pl.BlockSpec((block_rows, lane), lambda i: (i, 0)),
        ),
        compiler_params=pltpu.CompilerParams(
            # "parallel" lets v7x shard the row-tile axis across its 2 TCs;
            # no-op on single-TC v5e/v6e.
            dimension_semantics=("parallel",),
            # Worst case pipelined VMEM here is 16 MiB (2 x (4+4) MiB), so
            # 32 MiB is safe on every generation including v7x (64 MiB phys).
            vmem_limit_bytes=32 * 1024 * 1024,
        ),
    )(x2d)

    return out2d.reshape(orig_shape)


if __name__ == "__main__":
    scale = 1.0 / 255.0  # deterministic "parameter" of the module
    key = jax.random.PRNGKey(0)
    k1, k2, k3 = jax.random.split(key, 3)

    # 1) Tiny f32 feature map -> small-input fast path (fused XLA multiply).
    x_small = jax.random.normal(k1, (2, 4, 16, 16), dtype=jnp.float32)
    out_small = jax.block_until_ready(scale_forward(x_small, scale))
    assert out_small.shape == x_small.shape and out_small.dtype == jnp.float32
    assert jnp.allclose(out_small, x_small * scale, atol=1e-6, rtol=1e-6)

    # 2) Atari-style uint8 frames (DQN use case) -> Pallas kernel with the
    #    uint8 -> float32 promotion done inside the kernel (lane=512, rows=441).
    x_u8 = jax.random.randint(k2, (8, 4, 84, 84), 0, 256, dtype=jnp.int32).astype(jnp.uint8)
    out_u8 = jax.block_until_ready(scale_forward(x_u8, scale))
    ref_u8 = x_u8.astype(jnp.float32) * scale
    assert out_u8.shape == x_u8.shape and out_u8.dtype == jnp.float32
    assert jnp.allclose(out_u8, ref_u8, atol=1e-6, rtol=1e-6)

    # 3) f32 input exercising the multi-block grid with a masked partial last
    #    block (lane=1024, rows=1500, block_rows=1024, grid=(2,)), no padding.
    x_f32 = jax.random.normal(k3, (6, 4, 125, 512), dtype=jnp.float32)
    out_f32 = jax.block_until_ready(scale_forward(x_f32, scale))
    assert out_f32.shape == x_f32.shape and out_f32.dtype == jnp.float32
    assert jnp.allclose(out_f32, x_f32 * scale, atol=1e-6, rtol=1e-6)

    print("KERNEL_OK")
</pallas_src>

<mosaic_0001>
module attributes {stable_mosaic.version = 11 : i64} {
  func.func @kernel(%arg0: i32, %arg1: memref<441x512xi8, #tpu.memory_space<vmem>>, %arg2: memref<441x512xf32, #tpu.memory_space<vmem>>) attributes {dimension_semantics = [#tpu.dimension_semantics<parallel>], iteration_bounds = array<i64: 1>, scalar_prefetch = 0 : i64, scratch_operands = 0 : i64, tpu.core_type = #tpu.core_type<tc>, window_params = [{transform_indices = @transform_0, window_bounds = array<i64: 441, 512>}, {transform_indices = @transform_1, window_bounds = array<i64: 441, 512>}]} {
    %c0 = arith.constant 0 : index
    %c0_0 = arith.constant 0 : index
    %0 = vector.load %arg1[%c0, %c0_0] : memref<441x512xi8, #tpu.memory_space<vmem>>, vector<441x512xi8>
    %1 = arith.uitofp %0 : vector<441x512xi8> to vector<441x512xf32>
    %cst = arith.constant 0.00392156886 : f32
    %2 = vector.broadcast %cst : f32 to vector<441x512xf32>
    %3 = arith.mulf %1, %2 : vector<441x512xf32>
    %c0_1 = arith.constant 0 : index
    %c0_2 = arith.constant 0 : index
    %4 = vector.load %arg2[%c0_1, %c0_2] : memref<441x512xf32, #tpu.memory_space<vmem>>, vector<441x512xf32>
    tpu.vector_store %arg2[%c0_1, %c0_2], %3 {strides = array<i32>} : memref<441x512xf32, #tpu.memory_space<vmem>>, vector<441x512xf32>,
    return
  }
  func.func @transform_0(%arg0: i32) -> (i32, i32) {
    %c0_i32 = arith.constant 0 : i32
    %c0_i32_0 = arith.constant 0 : i32
    return %arg0, %c0_i32 : i32, i32
  }
  func.func @transform_1(%arg0: i32) -> (i32, i32) {
    %c0_i32 = arith.constant 0 : i32
    %c0_i32_0 = arith.constant 0 : i32
    return %arg0, %c0_i32 : i32, i32
  }
}

</mosaic_0001>

<llo_original>
// kernel: tpu_custom_call.1
$region0: #{tpu_custom_call.1}
  #allocation0 [shape = 'u32[]', space=smem, size = 0x4, offset = 0x4, fixed_abs, tag = 'smem constant byte address 0x4 - core index']
  #allocation1 [shape = 'u32[144,128]{1,0:T(1,128)}', space=vmem, size = 0x12000, scoped, tag = 'internal scratch']
  %s0 = inlined_call_operand.hbm [shape: u8[441,512], index: 0, kind: input, shape index: {}]
  %s1 = inlined_call_operand.hbm [shape: f32[441,512], index: 1, kind: output, shape index: {}]
  %s2 = sld [smem:[#allocation0]]
  $region18: #{tpu_custom_call.1} parent=0
    _
  %s4 = ssub.s32 1, %s2
  %s5 = scalar_select 0, %s4, %s2
  $region1: #{tpu_custom_call.1} parent=0
    #allocation2 [shape = 'u8[229376]{0}', space=vmem, size = 0x38000, scoped, tag = 'input window, operand 0, single buffered']
    #allocation3 [shape = 's32[1]{0}', space=sflag, size = 0x4, scoped, tag = 'scoped memory for tpu_custom_call.1']
    #allocation4 [shape = 's32[1]{0}', space=sflag, size = 0x4, scoped, tag = 'scoped memory for tpu_custom_call.1']
    #allocation5 [shape = 'u8[917504]{0}', space=vmem, size = 0xe0000, scoped, tag = 'output window, operand 0, single buffered']
    %6 = vsyncpa [#allocation3], 0
    %7 = vsyncpa [#allocation4], 0
    // Predicated region
    $region2: #{tpu_custom_call.1} parent=1 // pred_check
      _
    $region3: #{tpu_custom_call.1} parent=1 // pred_check_branch
      %9 = sbr.rel (0) target = $region5
    $region4: #{tpu_custom_call.1} parent=1 // pred_region
      %s11 = ssub.s32 7168, 7168
      %12 = vsyncadd [#allocation3], %s11
      %s13 = sshll.u32 [#allocation2], 4
      %s14 = int_to_ptr.vmem [resolvable:$true] %s13
      %19 = dma.hbm_to_vmem [thread:$0]  %s0, 7168, %s14, [#allocation3], 128, 128, 8
    $region5: #{tpu_custom_call.1} parent=1 // pred_fallthru
      _
    // Predicated region
    $region6: #{tpu_custom_call.1} parent=1 // pred_check
      _
    $region7: #{tpu_custom_call.1} parent=1 // pred_check_branch
      %21 = sbr.rel (0) target = $region9
    $region8: #{tpu_custom_call.1} parent=1 // pred_region
      %22 = dma.done [#allocation3], 7168
    $region9: #{tpu_custom_call.1} parent=1 // pred_fallthru
      _
    %v23 = vld [vmem:[#allocation2] sm:$0xff]
    %v24 = vld [vmem:[#allocation2 + $0x8] sm:$0xff]
    %v25 = vld [vmem:[#allocation2 + $0x10] sm:$0xff]
    %v26 = vld [vmem:[#allocation2 + $0x18] sm:$0xff]
    %v27 = vld [vmem:[#allocation2 + $0x20] sm:$0xff]
    %v28 = vld [vmem:[#allocation2 + $0x28] sm:$0xff]
    %v29 = vld [vmem:[#allocation2 + $0x30] sm:$0xff]
    %v30 = vld [vmem:[#allocation2 + $0x38] sm:$0xff]
    %v31 = vld [vmem:[#allocation2 + $0x40] sm:$0xff]
    %v32 = vld [vmem:[#allocation2 + $0x48] sm:$0xff]
    %v33 = vld [vmem:[#allocation2 + $0x50] sm:$0xff]
    %v34 = vld [vmem:[#allocation2 + $0x58] sm:$0xff]
    %v35 = vld [vmem:[#allocation2 + $0x60] sm:$0xff]
    %v36 = vld [vmem:[#allocation2 + $0x68] sm:$0xff]
    %v37 = vld [vmem:[#allocation2 + $0x70] sm:$0xff]
    %v38 = vld [vmem:[#allocation2 + $0x78] sm:$0xff]
    %v39 = vld [vmem:[#allocation2 + $0x80] sm:$0xff]
    %v40 = vld [vmem:[#allocation2 + $0x88] sm:$0xff]
    %v41 = vld [vmem:[#allocation2 + $0x90] sm:$0xff]
    %v42 = vld [vmem:[#allocation2 + $0x98] sm:$0xff]
    %v43 = vld [vmem:[#allocation2 + $0xa0] sm:$0xff]
    %v44 = vld [vmem:[#allocation2 + $0xa8] sm:$0xff]
    %v45 = vld [vmem:[#allocation2 + $0xb0] sm:$0xff]
    %v46 = vld [vmem:[#allocation2 + $0xb8] sm:$0xff]
    %v47 = vld [vmem:[#allocation2 + $0xc0] sm:$0xff]
    %v48 = vld [vmem:[#allocation2 + $0xc8] sm:$0xff]
    %v49 = vld [vmem:[#allocation2 + $0xd0] sm:$0xff]
    %v50 = vld [vmem:[#allocation2 + $0xd8] sm:$0xff]
    %v51 = vld [vmem:[#allocation2 + $0xe0] sm:$0xff]
    %v52 = vld [vmem:[#allocation2 + $0xe8] sm:$0xff]
    %v53 = vld [vmem:[#allocation2 + $0xf0] sm:$0xff]
    %v54 = vld [vmem:[#allocation2 + $0xf8] sm:$0xff]
    %v55 = vld [vmem:[#allocation2 + $0x100] sm:$0xff]
    %v56 = vld [vmem:[#allocation2 + $0x108] sm:$0xff]
    %v57 = vld [vmem:[#allocation2 + $0x110] sm:$0xff]
    %v58 = vld [vmem:[#allocation2 + $0x118] sm:$0xff]
    %v59 = vld [vmem:[#allocation2 + $0x120] sm:$0xff]
    %v60 = vld [vmem:[#allocation2 + $0x128] sm:$0xff]
    %v61 = vld [vmem:[#allocation2 + $0x130] sm:$0xff]
    %v62 = vld [vmem:[#allocation2 + $0x138] sm:$0xff]
    %v63 = vld [vmem:[#allocation2 + $0x140] sm:$0xff]
    %v64 = vld [vmem:[#allocation2 + $0x148] sm:$0xff]
    %v65 = vld [vmem:[#allocation2 + $0x150] sm:$0xff]
    %v66 = vld [vmem:[#allocation2 + $0x158] sm:$0xff]
    %v67 = vld [vmem:[#allocation2 + $0x160] sm:$0xff]
    %v68 = vld [vmem:[#allocation2 + $0x168] sm:$0xff]
    %v69 = vld [vmem:[#allocation2 + $0x170] sm:$0xff]
    %v70 = vld [vmem:[#allocation2 + $0x178] sm:$0xff]
    %v71 = vld [vmem:[#allocation2 + $0x180] sm:$0xff]
    %v72 = vld [vmem:[#allocation2 + $0x188] sm:$0xff]
    %v73 = vld [vmem:[#allocation2 + $0x190] sm:$0xff]
    %v74 = vld [vmem:[#allocation2 + $0x198] sm:$0xff]
    %v75 = vld [vmem:[#allocation2 + $0x1a0] sm:$0xff]
    %v76 = vld [vmem:[#allocation2 + $0x1a8] sm:$0xff]
    %v77 = vld [vmem:[#allocation2 + $0x1b0] sm:$0xff]
    %v78 = vld [vmem:[#allocation2 + $0x1b8] sm:$0x55]
    %v79 = vunpack.c.0.s8 %v23
    %v80 = vunpack.c.1.s8 %v23
    %v81 = vunpack.c.2.s8 %v23
    %v82 = vunpack.c.3.s8 %v23
    %v83 = vunpack.c.0.s8 %v24
    %v84 = vunpack.c.1.s8 %v24
    %v85 = vunpack.c.2.s8 %v24
    %v86 = vunpack.c.3.s8 %v24
    %v87 = vunpack.c.0.s8 %v25
    %v88 = vunpack.c.1.s8 %v25
    %v89 = vunpack.c.2.s8 %v25
    %v90 = vunpack.c.3.s8 %v25
    %v91 = vunpack.c.0.s8 %v26
    %v92 = vunpack.c.1.s8 %v26
    %v93 = vunpack.c.2.s8 %v26
    %v94 = vunpack.c.3.s8 %v26
    %v95 = vunpack.c.0.s8 %v27
    %v96 = vunpack.c.1.s8 %v27
    %v97 = vunpack.c.2.s8 %v27
    %v98 = vunpack.c.3.s8 %v27
    %v99 = vunpack.c.0.s8 %v28
    %v100 = vunpack.c.1.s8 %v28
    %v101 = vunpack.c.2.s8 %v28
    %v102 = vunpack.c.3.s8 %v28
    %v103 = vunpack.c.0.s8 %v29
    %v104 = vunpack.c.1.s8 %v29
    %v105 = vunpack.c.2.s8 %v29
    %v106 = vunpack.c.3.s8 %v29
    %v107 = vunpack.c.0.s8 %v30
    %v108 = vunpack.c.1.s8 %v30
    %v109 = vunpack.c.2.s8 %v30
    %v110 = vunpack.c.3.s8 %v30
    %v111 = vunpack.c.0.s8 %v31
    %v112 = vunpack.c.1.s8 %v31
    %v113 = vunpack.c.2.s8 %v31
    %v114 = vunpack.c.3.s8 %v31
    %v115 = vunpack.c.0.s8 %v32
    %v116 = vunpack.c.1.s8 %v32
    %v117 = vunpack.c.2.s8 %v32
    %v118 = vunpack.c.3.s8 %v32
    %v119 = vunpack.c.0.s8 %v33
    %v120 = vunpack.c.1.s8 %v33
    %v121 = vunpack.c.2.s8 %v33
    %v122 = vunpack.c.3.s8 %v33
    %v123 = vunpack.c.0.s8 %v34
    %v124 = vunpack.c.1.s8 %v34
    %v125 = vunpack.c.2.s8 %v34
    %v126 = vunpack.c.3.s8 %v34
    %v127 = vunpack.c.0.s8 %v35
    %v128 = vunpack.c.1.s8 %v35
    %v129 = vunpack.c.2.s8 %v35
    %v130 = vunpack.c.3.s8 %v35
    %v131 = vunpack.c.0.s8 %v36
    %v132 = vunpack.c.1.s8 %v36
    %v133 = vunpack.c.2.s8 %v36
    %v134 = vunpack.c.3.s8 %v36
    %v135 = vunpack.c.0.s8 %v37
    %v136 = vunpack.c.1.s8 %v37
    %v137 = vunpack.c.2.s8 %v37
    %v138 = vunpack.c.3.s8 %v37
    %v139 = vunpack.c.0.s8 %v38
    %v140 = vunpack.c.1.s8 %v38
    %v141 = vunpack.c.2.s8 %v38
    %v142 = vunpack.c.3.s8 %v38
    %v143 = vunpack.c.0.s8 %v39
    %v144 = vunpack.c.1.s8 %v39
    %v145 = vunpack.c.2.s8 %v39
    %v146 = vunpack.c.3.s8 %v39
    %v147 = vunpack.c.0.s8 %v40
    %v148 = vunpack.c.1.s8 %v40
    %v149 = vunpack.c.2.s8 %v40
    %v150 = vunpack.c.3.s8 %v40
    %v151 = vunpack.c.0.s8 %v41
    %v152 = vunpack.c.1.s8 %v41
    %v153 = vunpack.c.2.s8 %v41
    %v154 = vunpack.c.3.s8 %v41
    %v155 = vunpack.c.0.s8 %v42
    %v156 = vunpack.c.1.s8 %v42
    %v157 = vunpack.c.2.s8 %v42
    %v158 = vunpack.c.3.s8 %v42
    %v159 = vunpack.c.0.s8 %v43
    %v160 = vunpack.c.1.s8 %v43
    %v161 = vunpack.c.2.s8 %v43
    %v162 = vunpack.c.3.s8 %v43
    %v163 = vunpack.c.0.s8 %v44
    %v164 = vunpack.c.1.s8 %v44
    %v165 = vunpack.c.2.s8 %v44
    %v166 = vunpack.c.3.s8 %v44
    %v167 = vunpack.c.0.s8 %v45
    %v168 = vunpack.c.1.s8 %v45
    %v169 = vunpack.c.2.s8 %v45
    %v170 = vunpack.c.3.s8 %v45
    %v171 = vunpack.c.0.s8 %v46
    %v172 = vunpack.c.1.s8 %v46
    %v173 = vunpack.c.2.s8 %v46
    %v174 = vunpack.c.3.s8 %v46
    %v175 = vunpack.c.0.s8 %v47
    %v176 = vunpack.c.1.s8 %v47
    %v177 = vunpack.c.2.s8 %v47
    %v178 = vunpack.c.3.s8 %v47
    %v179 = vunpack.c.0.s8 %v48
    %v180 = vunpack.c.1.s8 %v48
    %v181 = vunpack.c.2.s8 %v48
    %v182 = vunpack.c.3.s8 %v48
    %v183 = vunpack.c.0.s8 %v49
    %v184 = vunpack.c.1.s8 %v49
    %v185 = vunpack.c.2.s8 %v49
    %v186 = vunpack.c.3.s8 %v49
    %v187 = vunpack.c.0.s8 %v50
    %v188 = vunpack.c.1.s8 %v50
    %v189 = vunpack.c.2.s8 %v50
    %v190 = vunpack.c.3.s8 %v50
    %v191 = vunpack.c.0.s8 %v51
    %v192 = vunpack.c.1.s8 %v51
    %v193 = vunpack.c.2.s8 %v51
    %v194 = vunpack.c.3.s8 %v51
    %v195 = vunpack.c.0.s8 %v52
    %v196 = vunpack.c.1.s8 %v52
    %v197 = vunpack.c.2.s8 %v52
    %v198 = vunpack.c.3.s8 %v52
    %v199 = vunpack.c.0.s8 %v53
    %v200 = vunpack.c.1.s8 %v53
    %v201 = vunpack.c.2.s8 %v53
    %v202 = vunpack.c.3.s8 %v53
    %v203 = vunpack.c.0.s8 %v54
    %v204 = vunpack.c.1.s8 %v54
    %v205 = vunpack.c.2.s8 %v54
    %v206 = vunpack.c.3.s8 %v54
    %v207 = vunpack.c.0.s8 %v55
    %v208 = vunpack.c.1.s8 %v55
    %v209 = vunpack.c.2.s8 %v55
    %v210 = vunpack.c.3.s8 %v55
    %v211 = vunpack.c.0.s8 %v56
    %v212 = vunpack.c.1.s8 %v56
    %v213 = vunpack.c.2.s8 %v56
    %v214 = vunpack.c.3.s8 %v56
    %v215 = vunpack.c.0.s8 %v57
    %v216 = vunpack.c.1.s8 %v57
    %v217 = vunpack.c.2.s8 %v57
    %v218 = vunpack.c.3.s8 %v57
    %v219 = vunpack.c.0.s8 %v58
    %v220 = vunpack.c.1.s8 %v58
    %v221 = vunpack.c.2.s8 %v58
    %v222 = vunpack.c.3.s8 %v58
    %v223 = vunpack.c.0.s8 %v59
    %v224 = vunpack.c.1.s8 %v59
    %v225 = vunpack.c.2.s8 %v59
    %v226 = vunpack.c.3.s8 %v59
    %v227 = vunpack.c.0.s8 %v60
    %v228 = vunpack.c.1.s8 %v60
    %v229 = vunpack.c.2.s8 %v60
    %v230 = vunpack.c.3.s8 %v60
    %v231 = vunpack.c.0.s8 %v61
    %v232 = vunpack.c.1.s8 %v61
    %v233 = vunpack.c.2.s8 %v61
    %v234 = vunpack.c.3.s8 %v61
    %v235 = vunpack.c.0.s8 %v62
    %v236 = vunpack.c.1.s8 %v62
    %v237 = vunpack.c.2.s8 %v62
    %v238 = vunpack.c.3.s8 %v62
    %v239 = vunpack.c.0.s8 %v63
    %v240 = vunpack.c.1.s8 %v63
    %v241 = vunpack.c.2.s8 %v63
    %v242 = vunpack.c.3.s8 %v63
    %v243 = vunpack.c.0.s8 %v64
    %v244 = vunpack.c.1.s8 %v64
    %v245 = vunpack.c.2.s8 %v64
    %v246 = vunpack.c.3.s8 %v64
    %v247 = vunpack.c.0.s8 %v65
    %v248 = vunpack.c.1.s8 %v65
    %v249 = vunpack.c.2.s8 %v65
    %v250 = vunpack.c.3.s8 %v65
    %v251 = vunpack.c.0.s8 %v66
    %v252 = vunpack.c.1.s8 %v66
    %v253 = vunpack.c.2.s8 %v66
    %v254 = vunpack.c.3.s8 %v66
    %v255 = vunpack.c.0.s8 %v67
    %v256 = vunpack.c.1.s8 %v67
    %v257 = vunpack.c.2.s8 %v67
    %v258 = vunpack.c.3.s8 %v67
    %v259 = vunpack.c.0.s8 %v68
    %v260 = vunpack.c.1.s8 %v68
    %v261 = vunpack.c.2.s8 %v68
    %v262 = vunpack.c.3.s8 %v68
    %v263 = vunpack.c.0.s8 %v69
    %v264 = vunpack.c.1.s8 %v69
    %v265 = vunpack.c.2.s8 %v69
    %v266 = vunpack.c.3.s8 %v69
    %v267 = vunpack.c.0.s8 %v70
    %v268 = vunpack.c.1.s8 %v70
    %v269 = vunpack.c.2.s8 %v70
    %v270 = vunpack.c.3.s8 %v70
    %v271 = vunpack.c.0.s8 %v71
    %v272 = vunpack.c.1.s8 %v71
    %v273 = vunpack.c.2.s8 %v71
    %v274 = vunpack.c.3.s8 %v71
    %v275 = vunpack.c.0.s8 %v72
    %v276 = vunpack.c.1.s8 %v72
    %v277 = vunpack.c.2.s8 %v72
    %v278 = vunpack.c.3.s8 %v72
    %v279 = vunpack.c.0.s8 %v73
    %v280 = vunpack.c.1.s8 %v73
    %v281 = vunpack.c.2.s8 %v73
    %v282 = vunpack.c.3.s8 %v73
    %v283 = vunpack.c.0.s8 %v74
    %v284 = vunpack.c.1.s8 %v74
    %v285 = vunpack.c.2.s8 %v74
    %v286 = vunpack.c.3.s8 %v74
    %v287 = vunpack.c.0.s8 %v75
    %v288 = vunpack.c.1.s8 %v75
    %v289 = vunpack.c.2.s8 %v75
    %v290 = vunpack.c.3.s8 %v75
    %v291 = vunpack.c.0.s8 %v76
    %v292 = vunpack.c.1.s8 %v76
    %v293 = vunpack.c.2.s8 %v76
    %v294 = vunpack.c.3.s8 %v76
    %v295 = vunpack.c.0.s8 %v77
    %v296 = vunpack.c.1.s8 %v77
    %v297 = vunpack.c.2.s8 %v77
    %v298 = vunpack.c.3.s8 %v77
    %v299 = vunpack.c.0.s8 %v78
    %v300 = vunpack.c.1.s8 %v78
    %v301 = vunpack.c.2.s8 %v78
    %v302 = vunpack.c.3.s8 %v78
    %v303 = vand.u32 %v79, 255
    %v304 = vand.u32 %v80, 255
    %v305 = vand.u32 %v81, 255
    %v306 = vand.u32 %v82, 255
    %v307 = vand.u32 %v83, 255
    %v308 = vand.u32 %v84, 255
    %v309 = vand.u32 %v85, 255
    %v310 = vand.u32 %v86, 255
    %v311 = vand.u32 %v87, 255
    %v312 = vand.u32 %v88, 255
    %v313 = vand.u32 %v89, 255
    %v314 = vand.u32 %v90, 255
    %v315 = vand.u32 %v91, 255
    %v316 = vand.u32 %v92, 255
    %v317 = vand.u32 %v93, 255
    %v318 = vand.u32 %v94, 255
    %v319 = vand.u32 %v95, 255
    %v320 = vand.u32 %v96, 255
    %v321 = vand.u32 %v97, 255
    %v322 = vand.u32 %v98, 255
    %v323 = vand.u32 %v99, 255
    %v324 = vand.u32 %v100, 255
    %v325 = vand.u32 %v101, 255
    %v326 = vand.u32 %v102, 255
    %v327 = vand.u32 %v103, 255
    %v328 = vand.u32 %v104, 255
    %v329 = vand.u32 %v105, 255
    %v330 = vand.u32 %v106, 255
    %v331 = vand.u32 %v107, 255
    %v332 = vand.u32 %v108, 255
    %v333 = vand.u32 %v109, 255
    %v334 = vand.u32 %v110, 255
    %v335 = vand.u32 %v111, 255
    %v336 = vand.u32 %v112, 255
    %v337 = vand.u32 %v113, 255
    %v338 = vand.u32 %v114, 255
    %v339 = vand.u32 %v115, 255
    %v340 = vand.u32 %v116, 255
    %v341 = vand.u32 %v117, 255
    %v342 = vand.u32 %v118, 255
    %v343 = vand.u32 %v119, 255
    %v344 = vand.u32 %v120, 255
    %v345 = vand.u32 %v121, 255
    %v346 = vand.u32 %v122, 255
    %v347 = vand.u32 %v123, 255
    %v348 = vand.u32 %v124, 255
    %v349 = vand.u32 %v125, 255
    %v350 = vand.u32 %v126, 255
    %v351 = vand.u32 %v127, 255
    %v352 = vand.u32 %v128, 255
    %v353 = vand.u32 %v129, 255
    %v354 = vand.u32 %v130, 255
    %v355 = vand.u32 %v131, 255
    %v356 = vand.u32 %v132, 255
    %v357 = vand.u32 %v133, 255
    %v358 = vand.u32 %v134, 255
    %v359 = vand.u32 %v135, 255
    %v360 = vand.u32 %v136, 255
    %v361 = vand.u32 %v137, 255
    %v362 = vand.u32 %v138, 255
    %v363 = vand.u32 %v139, 255
    %v364 = vand.u32 %v140, 255
    %v365 = vand.u32 %v141, 255
    %v366 = vand.u32 %v142, 255
    %v367 = vand.u32 %v143, 255
    %v368 = vand.u32 %v144, 255
    %v369 = vand.u32 %v145, 255
    %v370 = vand.u32 %v146, 255
    %v371 = vand.u32 %v147, 255
    %v372 = vand.u32 %v148, 255
    %v373 = vand.u32 %v149, 255
    %v374 = vand.u32 %v150, 255
    %v375 = vand.u32 %v151, 255
    %v376 = vand.u32 %v152, 255
    %v377 = vand.u32 %v153, 255
    %v378 = vand.u32 %v154, 255
    %v379 = vand.u32 %v155, 255
    %v380 = vand.u32 %v156, 255
    %v381 = vand.u32 %v157, 255
    %v382 = vand.u32 %v158, 255
    %v383 = vand.u32 %v159, 255
    %v384 = vand.u32 %v160, 255
    %v385 = vand.u32 %v161, 255
    %v386 = vand.u32 %v162, 255
    %v387 = vand.u32 %v163, 255
    %v388 = vand.u32 %v164, 255
    %v389 = vand.u32 %v165, 255
    %v390 = vand.u32 %v166, 255
    %v391 = vand.u32 %v167, 255
    %v392 = vand.u32 %v168, 255
    %v393 = vand.u32 %v169, 255
    %v394 = vand.u32 %v170, 255
    %v395 = vand.u32 %v171, 255
    %v396 = vand.u32 %v172, 255
    %v397 = vand.u32 %v173, 255
    %v398 = vand.u32 %v174, 255
    %v399 = vand.u32 %v175, 255
    %v400 = vand.u32 %v176, 255
    %v401 = vand.u32 %v177, 255
    %v402 = vand.u32 %v178, 255
    %v403 = vand.u32 %v179, 255
    %v404 = vand.u32 %v180, 255
    %v405 = vand.u32 %v181, 255
    %v406 = vand.u32 %v182, 255
    %v407 = vand.u32 %v183, 255
    %v408 = vand.u32 %v184, 255
    %v409 = vand.u32 %v185, 255
    %v410 = vand.u32 %v186, 255
    %v411 = vand.u32 %v187, 255
    %v412 = vand.u32 %v188, 255
    %v413 = vand.u32 %v189, 255
    %v414 = vand.u32 %v190, 255
    %v415 = vand.u32 %v191, 255
    %v416 = vand.u32 %v192, 255
    %v417 = vand.u32 %v193, 255
    %v418 = vand.u32 %v194, 255
    %v419 = vand.u32 %v195, 255
    %v420 = vand.u32 %v196, 255
    %v421 = vand.u32 %v197, 255
    %v422 = vand.u32 %v198, 255
    %v423 = vand.u32 %v199, 255
    %v424 = vand.u32 %v200, 255
    %v425 = vand.u32 %v201, 255
    %v426 = vand.u32 %v202, 255
    %v427 = vand.u32 %v203, 255
    %v428 = vand.u32 %v204, 255
    %v429 = vand.u32 %v205, 255
    %v430 = vand.u32 %v206, 255
    %v431 = vand.u32 %v207, 255
    %v432 = vand.u32 %v208, 255
    %v433 = vand.u32 %v209, 255
    %v434 = vand.u32 %v210, 255
    %v435 = vand.u32 %v211, 255
    %v436 = vand.u32 %v212, 255
    %v437 = vand.u32 %v213, 255
    %v438 = vand.u32 %v214, 255
    %v439 = vand.u32 %v215, 255
    %v440 = vand.u32 %v216, 255
    %v441 = vand.u32 %v217, 255
    %v442 = vand.u32 %v218, 255
    %v443 = vand.u32 %v219, 255
    %v444 = vand.u32 %v220, 255
    %v445 = vand.u32 %v221, 255
    %v446 = vand.u32 %v222, 255
    %v447 = vand.u32 %v223, 255
    %v448 = vand.u32 %v224, 255
    %v449 = vand.u32 %v225, 255
    %v450 = vand.u32 %v226, 255
    %v451 = vand.u32 %v227, 255
    %v452 = vand.u32 %v228, 255
    %v453 = vand.u32 %v229, 255
    %v454 = vand.u32 %v230, 255
    %v455 = vand.u32 %v231, 255
    %v456 = vand.u32 %v232, 255
    %v457 = vand.u32 %v233, 255
    %v458 = vand.u32 %v234, 255
    %v459 = vand.u32 %v235, 255
    %v460 = vand.u32 %v236, 255
    %v461 = vand.u32 %v237, 255
    %v462 = vand.u32 %v238, 255
    %v463 = vand.u32 %v239, 255
    %v464 = vand.u32 %v240, 255
    %v465 = vand.u32 %v241, 255
    %v466 = vand.u32 %v242, 255
    %v467 = vand.u32 %v243, 255
    %v468 = vand.u32 %v244, 255
    %v469 = vand.u32 %v245, 255
    %v470 = vand.u32 %v246, 255
    %v471 = vand.u32 %v247, 255
    %v472 = vand.u32 %v248, 255
    %v473 = vand.u32 %v249, 255
    %v474 = vand.u32 %v250, 255
    %v475 = vand.u32 %v251, 255
    %v476 = vand.u32 %v252, 255
    %v477 = vand.u32 %v253, 255
    %v478 = vand.u32 %v254, 255
    %v479 = vand.u32 %v255, 255
    %v480 = vand.u32 %v256, 255
    %v481 = vand.u32 %v257, 255
    %v482 = vand.u32 %v258, 255
    %v483 = vand.u32 %v259, 255
    %v484 = vand.u32 %v260, 255
    %v485 = vand.u32 %v261, 255
    %v486 = vand.u32 %v262, 255
    %v487 = vand.u32 %v263, 255
    %v488 = vand.u32 %v264, 255
    %v489 = vand.u32 %v265, 255
    %v490 = vand.u32 %v266, 255
    %v491 = vand.u32 %v267, 255
    %v492 = vand.u32 %v268, 255
    %v493 = vand.u32 %v269, 255
    %v494 = vand.u32 %v270, 255
    %v495 = vand.u32 %v271, 255
    %v496 = vand.u32 %v272, 255
    %v497 = vand.u32 %v273, 255
    %v498 = vand.u32 %v274, 255
    %v499 = vand.u32 %v275, 255
    %v500 = vand.u32 %v276, 255
    %v501 = vand.u32 %v277, 255
    %v502 = vand.u32 %v278, 255
    %v503 = vand.u32 %v279, 255
    %v504 = vand.u32 %v280, 255
    %v505 = vand.u32 %v281, 255
    %v506 = vand.u32 %v282, 255
    %v507 = vand.u32 %v283, 255
    %v508 = vand.u32 %v284, 255
    %v509 = vand.u32 %v285, 255
    %v510 = vand.u32 %v286, 255
    %v511 = vand.u32 %v287, 255
    %v512 = vand.u32 %v288, 255
    %v513 = vand.u32 %v289, 255
    %v514 = vand.u32 %v290, 255
    %v515 = vand.u32 %v291, 255
    %v516 = vand.u32 %v292, 255
    %v517 = vand.u32 %v293, 255
    %v518 = vand.u32 %v294, 255
    %v519 = vand.u32 %v295, 255
    %v520 = vand.u32 %v296, 255
    %v521 = vand.u32 %v297, 255
    %v522 = vand.u32 %v298, 255
    %v523 = vand.u32 %v299, 255
    %v524 = vand.u32 %v300, 255
    %v525 = vand.u32 %v301, 255
    %v526 = vand.u32 %v302, 255
    %v527 = vcvt.s32.f32 %v303
    %v528 = vcvt.s32.f32 %v304
    %v529 = vcvt.s32.f32 %v305
    %v530 = vcvt.s32.f32 %v306
    %v531 = vcvt.s32.f32 %v307
    %v532 = vcvt.s32.f32 %v308
    %v533 = vcvt.s32.f32 %v309
    %v534 = vcvt.s32.f32 %v310
    %v535 = vcvt.s32.f32 %v311
    %v536 = vcvt.s32.f32 %v312
    %v537 = vcvt.s32.f32 %v313
    %v538 = vcvt.s32.f32 %v314
    %v539 = vcvt.s32.f32 %v315
    %v540 = vcvt.s32.f32 %v316
    %v541 = vcvt.s32.f32 %v317
    %v542 = vcvt.s32.f32 %v318
    %v543 = vcvt.s32.f32 %v319
    %v544 = vcvt.s32.f32 %v320
    %v545 = vcvt.s32.f32 %v321
    %v546 = vcvt.s32.f32 %v322
    %v547 = vcvt.s32.f32 %v323
    %v548 = vcvt.s32.f32 %v324
    %v549 = vcvt.s32.f32 %v325
    %v550 = vcvt.s32.f32 %v326
    %v551 = vcvt.s32.f32 %v327
    %v552 = vcvt.s32.f32 %v328
    %v553 = vcvt.s32.f32 %v329
    %v554 = vcvt.s32.f32 %v330
    %v555 = vcvt.s32.f32 %v331
    %v556 = vcvt.s32.f32 %v332
    %v557 = vcvt.s32.f32 %v333
    %v558 = vcvt.s32.f32 %v334
    %v559 = vcvt.s32.f32 %v335
    %v560 = vcvt.s32.f32 %v336
    %v561 = vcvt.s32.f32 %v337
    %v562 = vcvt.s32.f32 %v338
    %v563 = vcvt.s32.f32 %v339
    %v564 = vcvt.s32.f32 %v340
    %v565 = vcvt.s32.f32 %v341
    %v566 = vcvt.s32.f32 %v342
    %v567 = vcvt.s32.f32 %v343
    %v568 = vcvt.s32.f32 %v344
    %v569 = vcvt.s32.f32 %v345
    %v570 = vcvt.s32.f32 %v346
    %v571 = vcvt.s32.f32 %v347
    %v572 = vcvt.s32.f32 %v348
    %v573 = vcvt.s32.f32 %v349
    %v574 = vcvt.s32.f32 %v350
    %v575 = vcvt.s32.f32 %v351
    %v576 = vcvt.s32.f32 %v352
    %v577 = vcvt.s32.f32 %v353
    %v578 = vcvt.s32.f32 %v354
    %v579 = vcvt.s32.f32 %v355
    %v580 = vcvt.s32.f32 %v356
    %v581 = vcvt.s32.f32 %v357
    %v582 = vcvt.s32.f32 %v358
    %v583 = vcvt.s32.f32 %v359
    %v584 = vcvt.s32.f32 %v360
    %v585 = vcvt.s32.f32 %v361
    %v586 = vcvt.s32.f32 %v362
    %v587 = vcvt.s32.f32 %v363
    %v588 = vcvt.s32.f32 %v364
    %v589 = vcvt.s32.f32 %v365
    %v590 = vcvt.s32.f32 %v366
    %v591 = vcvt.s32.f32 %v367
    %v592 = vcvt.s32.f32 %v368
    %v593 = vcvt.s32.f32 %v369
    %v594 = vcvt.s32.f32 %v370
    %v595 = vcvt.s32.f32 %v371
    %v596 = vcvt.s32.f32 %v372
    %v597 = vcvt.s32.f32 %v373
    %v598 = vcvt.s32.f32 %v374
    %v599 = vcvt.s32.f32 %v375
    %v600 = vcvt.s32.f32 %v376
    %v601 = vcvt.s32.f32 %v377
    %v602 = vcvt.s32.f32 %v378
    %v603 = vcvt.s32.f32 %v379
    %v604 = vcvt.s32.f32 %v380
    %v605 = vcvt.s32.f32 %v381
    %v606 = vcvt.s32.f32 %v382
    %v607 = vcvt.s32.f32 %v383
    %v608 = vcvt.s32.f32 %v384
    %v609 = vcvt.s32.f32 %v385
    %v610 = vcvt.s32.f32 %v386
    %v611 = vcvt.s32.f32 %v387
    %v612 = vcvt.s32.f32 %v388
    %v613 = vcvt.s32.f32 %v389
    %v614 = vcvt.s32.f32 %v390
    %v615 = vcvt.s32.f32 %v391
    %v616 = vcvt.s32.f32 %v392
    %v617 = vcvt.s32.f32 %v393
    %v618 = vcvt.s32.f32 %v394
    %v619 = vcvt.s32.f32 %v395
    %v620 = vcvt.s32.f32 %v396
    %v621 = vcvt.s32.f32 %v397
    %v622 = vcvt.s32.f32 %v398
    %v623 = vcvt.s32.f32 %v399
    %v624 = vcvt.s32.f32 %v400
    %v625 = vcvt.s32.f32 %v401
    %v626 = vcvt.s32.f32 %v402
    %v627 = vcvt.s32.f32 %v403
    %v628 = vcvt.s32.f32 %v404
    %v629 = vcvt.s32.f32 %v405
    %v630 = vcvt.s32.f32 %v406
    %v631 = vcvt.s32.f32 %v407
    %v632 = vcvt.s32.f32 %v408
    %v633 = vcvt.s32.f32 %v409
    %v634 = vcvt.s32.f32 %v410
    %v635 = vcvt.s32.f32 %v411
    %v636 = vcvt.s32.f32 %v412
    %v637 = vcvt.s32.f32 %v413
    %v638 = vcvt.s32.f32 %v414
    %v639 = vcvt.s32.f32 %v415
    %v640 = vcvt.s32.f32 %v416
    %v641 = vcvt.s32.f32 %v417
    %v642 = vcvt.s32.f32 %v418
    %v643 = vcvt.s32.f32 %v419
    %v644 = vcvt.s32.f32 %v420
    %v645 = vcvt.s32.f32 %v421
    %v646 = vcvt.s32.f32 %v422
    %v647 = vcvt.s32.f32 %v423
    %v648 = vcvt.s32.f32 %v424
    %v649 = vcvt.s32.f32 %v425
    %v650 = vcvt.s32.f32 %v426
    %v651 = vcvt.s32.f32 %v427
    %v652 = vcvt.s32.f32 %v428
    %v653 = vcvt.s32.f32 %v429
    %v654 = vcvt.s32.f32 %v430
    %v655 = vcvt.s32.f32 %v431
    %v656 = vcvt.s32.f32 %v432
    %v657 = vcvt.s32.f32 %v433
    %v658 = vcvt.s32.f32 %v434
    %v659 = vcvt.s32.f32 %v435
    %v660 = vcvt.s32.f32 %v436
    %v661 = vcvt.s32.f32 %v437
    %v662 = vcvt.s32.f32 %v438
    %v663 = vcvt.s32.f32 %v439
    %v664 = vcvt.s32.f32 %v440
    %v665 = vcvt.s32.f32 %v441
    %v666 = vcvt.s32.f32 %v442
    %v667 = vcvt.s32.f32 %v443
    %v668 = vcvt.s32.f32 %v444
    %v669 = vcvt.s32.f32 %v445
    %v670 = vcvt.s32.f32 %v446
    %v671 = vcvt.s32.f32 %v447
    %v672 = vcvt.s32.f32 %v448
    %v673 = vcvt.s32.f32 %v449
    %v674 = vcvt.s32.f32 %v450
    %v675 = vcvt.s32.f32 %v451
    %v676 = vcvt.s32.f32 %v452
    %v677 = vcvt.s32.f32 %v453
    %v678 = vcvt.s32.f32 %v454
    %v679 = vcvt.s32.f32 %v455
    %v680 = vcvt.s32.f32 %v456
    %v681 = vcvt.s32.f32 %v457
    %v682 = vcvt.s32.f32 %v458
    %v683 = vcvt.s32.f32 %v459
    %v684 = vcvt.s32.f32 %v460
    %v685 = vcvt.s32.f32 %v461
    %v686 = vcvt.s32.f32 %v462
    %v687 = vcvt.s32.f32 %v463
    %v688 = vcvt.s32.f32 %v464
    %v689 = vcvt.s32.f32 %v465
    %v690 = vcvt.s32.f32 %v466
    %v691 = vcvt.s32.f32 %v467
    %v692 = vcvt.s32.f32 %v468
    %v693 = vcvt.s32.f32 %v469
    %v694 = vcvt.s32.f32 %v470
    %v695 = vcvt.s32.f32 %v471
    %v696 = vcvt.s32.f32 %v472
    %v697 = vcvt.s32.f32 %v473
    %v698 = vcvt.s32.f32 %v474
    %v699 = vcvt.s32.f32 %v475
    %v700 = vcvt.s32.f32 %v476
    %v701 = vcvt.s32.f32 %v477
    %v702 = vcvt.s32.f32 %v478
    %v703 = vcvt.s32.f32 %v479
    %v704 = vcvt.s32.f32 %v480
    %v705 = vcvt.s32.f32 %v481
    %v706 = vcvt.s32.f32 %v482
    %v707 = vcvt.s32.f32 %v483
    %v708 = vcvt.s32.f32 %v484
    %v709 = vcvt.s32.f32 %v485
    %v710 = vcvt.s32.f32 %v486
    %v711 = vcvt.s32.f32 %v487
    %v712 = vcvt.s32.f32 %v488
    %v713 = vcvt.s32.f32 %v489
    %v714 = vcvt.s32.f32 %v490
    %v715 = vcvt.s32.f32 %v491
    %v716 = vcvt.s32.f32 %v492
    %v717 = vcvt.s32.f32 %v493
    %v718 = vcvt.s32.f32 %v494
    %v719 = vcvt.s32.f32 %v495
    %v720 = vcvt.s32.f32 %v496
    %v721 = vcvt.s32.f32 %v497
    %v722 = vcvt.s32.f32 %v498
    %v723 = vcvt.s32.f32 %v499
    %v724 = vcvt.s32.f32 %v500
    %v725 = vcvt.s32.f32 %v501
    %v726 = vcvt.s32.f32 %v502
    %v727 = vcvt.s32.f32 %v503
    %v728 = vcvt.s32.f32 %v504
    %v729 = vcvt.s32.f32 %v505
    %v730 = vcvt.s32.f32 %v506
    %v731 = vcvt.s32.f32 %v507
    %v732 = vcvt.s32.f32 %v508
    %v733 = vcvt.s32.f32 %v509
    %v734 = vcvt.s32.f32 %v510
    %v735 = vcvt.s32.f32 %v511
    %v736 = vcvt.s32.f32 %v512
    %v737 = vcvt.s32.f32 %v513
    %v738 = vcvt.s32.f32 %v514
    %v739 = vcvt.s32.f32 %v515
    %v740 = vcvt.s32.f32 %v516
    %v741 = vcvt.s32.f32 %v517
    %v742 = vcvt.s32.f32 %v518
    %v743 = vcvt.s32.f32 %v519
    %v744 = vcvt.s32.f32 %v520
    %v745 = vcvt.s32.f32 %v521
    %v746 = vcvt.s32.f32 %v522
    %v747 = vcvt.s32.f32 %v523
    %v748 = vcvt.s32.f32 %v524
    %v749 = vcvt.s32.f32 %v525
    %v750 = vcvt.s32.f32 %v526
    %v751 = vmul.f32 %v527, 0.003921569
    %v752 = vmul.f32 %v528, 0.003921569
    %v753 = vmul.f32 %v529, 0.003921569
    %v754 = vmul.f32 %v530, 0.003921569
    %v755 = vmul.f32 %v531, 0.003921569
    %v756 = vmul.f32 %v532, 0.003921569
    %v757 = vmul.f32 %v533, 0.003921569
    %v758 = vmul.f32 %v534, 0.003921569
    %v759 = vmul.f32 %v535, 0.003921569
    %v760 = vmul.f32 %v536, 0.003921569
    %v761 = vmul.f32 %v537, 0.003921569
    %v762 = vmul.f32 %v538, 0.003921569
    %v763 = vmul.f32 %v539, 0.003921569
    %v764 = vmul.f32 %v540, 0.003921569
    %v765 = vmul.f32 %v541, 0.003921569
    %v766 = vmul.f32 %v542, 0.003921569
    %v767 = vmul.f32 %v543, 0.003921569
    %v768 = vmul.f32 %v544, 0.003921569
    %v769 = vmul.f32 %v545, 0.003921569
    %v770 = vmul.f32 %v546, 0.003921569
    %v771 = vmul.f32 %v547, 0.003921569
    %v772 = vmul.f32 %v548, 0.003921569
    %v773 = vmul.f32 %v549, 0.003921569
    %v774 = vmul.f32 %v550, 0.003921569
    %v775 = vmul.f32 %v551, 0.003921569
    %v776 = vmul.f32 %v552, 0.003921569
    %v777 = vmul.f32 %v553, 0.003921569
    %v778 = vmul.f32 %v554, 0.003921569
    %v779 = vmul.f32 %v555, 0.003921569
    %v780 = vmul.f32 %v556, 0.003921569
    %v781 = vmul.f32 %v557, 0.003921569
    %v782 = vmul.f32 %v558, 0.003921569
    %v783 = vmul.f32 %v559, 0.003921569
    %v784 = vmul.f32 %v560, 0.003921569
    %v785 = vmul.f32 %v561, 0.003921569
    %v786 = vmul.f32 %v562, 0.003921569
    %v787 = vmul.f32 %v563, 0.003921569
    %v788 = vmul.f32 %v564, 0.003921569
    %v789 = vmul.f32 %v565, 0.003921569
    %v790 = vmul.f32 %v566, 0.003921569
    %v791 = vmul.f32 %v567, 0.003921569
    %v792 = vmul.f32 %v568, 0.003921569
    %v793 = vmul.f32 %v569, 0.003921569
    %v794 = vmul.f32 %v570, 0.003921569
    %v795 = vmul.f32 %v571, 0.003921569
    %v796 = vmul.f32 %v572, 0.003921569
    %v797 = vmul.f32 %v573, 0.003921569
    %v798 = vmul.f32 %v574, 0.003921569
    %v799 = vmul.f32 %v575, 0.003921569
    %v800 = vmul.f32 %v576, 0.003921569
    %v801 = vmul.f32 %v577, 0.003921569
    %v802 = vmul.f32 %v578, 0.003921569
    %v803 = vmul.f32 %v579, 0.003921569
    %v804 = vmul.f32 %v580, 0.003921569
    %v805 = vmul.f32 %v581, 0.003921569
    %v806 = vmul.f32 %v582, 0.003921569
    %v807 = vmul.f32 %v583, 0.003921569
    %v808 = vmul.f32 %v584, 0.003921569
    %v809 = vmul.f32 %v585, 0.003921569
    %v810 = vmul.f32 %v586, 0.003921569
    %v811 = vmul.f32 %v587, 0.003921569
    %v812 = vmul.f32 %v588, 0.003921569
    %v813 = vmul.f32 %v589, 0.003921569
    %v814 = vmul.f32 %v590, 0.003921569
    %v815 = vmul.f32 %v591, 0.003921569
    %v816 = vmul.f32 %v592, 0.003921569
    %v817 = vmul.f32 %v593, 0.003921569
    %v818 = vmul.f32 %v594, 0.003921569
    %v819 = vmul.f32 %v595, 0.003921569
    %v820 = vmul.f32 %v596, 0.003921569
    %v821 = vmul.f32 %v597, 0.003921569
    %v822 = vmul.f32 %v598, 0.003921569
    %v823 = vmul.f32 %v599, 0.003921569
    %v824 = vmul.f32 %v600, 0.003921569
    %v825 = vmul.f32 %v601, 0.003921569
    %v826 = vmul.f32 %v602, 0.003921569
    %v827 = vmul.f32 %v603, 0.003921569
    %v828 = vmul.f32 %v604, 0.003921569
    %v829 = vmul.f32 %v605, 0.003921569
    %v830 = vmul.f32 %v606, 0.003921569
    %v831 = vmul.f32 %v607, 0.003921569
    %v832 = vmul.f32 %v608, 0.003921569
    %v833 = vmul.f32 %v609, 0.003921569
    %v834 = vmul.f32 %v610, 0.003921569
    %v835 = vmul.f32 %v611, 0.003921569
    %v836 = vmul.f32 %v612, 0.003921569
    %v837 = vmul.f32 %v613, 0.003921569
    %v838 = vmul.f32 %v614, 0.003921569
    %v839 = vmul.f32 %v615, 0.003921569
    %v840 = vmul.f32 %v616, 0.003921569
    %v841 = vmul.f32 %v617, 0.003921569
    %v842 = vmul.f32 %v618, 0.003921569
    %v843 = vmul.f32 %v619, 0.003921569
    %v844 = vmul.f32 %v620, 0.003921569
    %v845 = vmul.f32 %v621, 0.003921569
    %v846 = vmul.f32 %v622, 0.003921569
    %v847 = vmul.f32 %v623, 0.003921569
    %v848 = vmul.f32 %v624, 0.003921569
    %v849 = vmul.f32 %v625, 0.003921569
    %v850 = vmul.f32 %v626, 0.003921569
    %v851 = vmul.f32 %v627, 0.003921569
    %v852 = vmul.f32 %v628, 0.003921569
    %v853 = vmul.f32 %v629, 0.003921569
    %v854 = vmul.f32 %v630, 0.003921569
    %v855 = vmul.f32 %v631, 0.003921569
    %v856 = vmul.f32 %v632, 0.003921569
    %v857 = vmul.f32 %v633, 0.003921569
    %v858 = vmul.f32 %v634, 0.003921569
    %v859 = vmul.f32 %v635, 0.003921569
    %v860 = vmul.f32 %v636, 0.003921569
    %v861 = vmul.f32 %v637, 0.003921569
    %v862 = vmul.f32 %v638, 0.003921569
    %v863 = vmul.f32 %v639, 0.003921569
    %v864 = vmul.f32 %v640, 0.003921569
    %v865 = vmul.f32 %v641, 0.003921569
    %v866 = vmul.f32 %v642, 0.003921569
    %v867 = vmul.f32 %v643, 0.003921569
    %v868 = vmul.f32 %v644, 0.003921569
    %v869 = vmul.f32 %v645, 0.003921569
    %v870 = vmul.f32 %v646, 0.003921569
    %v871 = vmul.f32 %v647, 0.003921569
    %v872 = vmul.f32 %v648, 0.003921569
    %v873 = vmul.f32 %v649, 0.003921569
    %v874 = vmul.f32 %v650, 0.003921569
    %v875 = vmul.f32 %v651, 0.003921569
    %v876 = vmul.f32 %v652, 0.003921569
    %v877 = vmul.f32 %v653, 0.003921569
    %v878 = vmul.f32 %v654, 0.003921569
    %v879 = vmul.f32 %v655, 0.003921569
    %v880 = vmul.f32 %v656, 0.003921569
    %v881 = vmul.f32 %v657, 0.003921569
    %v882 = vmul.f32 %v658, 0.003921569
    %v883 = vmul.f32 %v659, 0.003921569
    %v884 = vmul.f32 %v660, 0.003921569
    %v885 = vmul.f32 %v661, 0.003921569
    %v886 = vmul.f32 %v662, 0.003921569
    %v887 = vmul.f32 %v663, 0.003921569
    %v888 = vmul.f32 %v664, 0.003921569
    %v889 = vmul.f32 %v665, 0.003921569
    %v890 = vmul.f32 %v666, 0.003921569
    %v891 = vmul.f32 %v667, 0.003921569
    %v892 = vmul.f32 %v668, 0.003921569
    %v893 = vmul.f32 %v669, 0.003921569
    %v894 = vmul.f32 %v670, 0.003921569
    %v895 = vmul.f32 %v671, 0.003921569
    %v896 = vmul.f32 %v672, 0.003921569
    %v897 = vmul.f32 %v673, 0.003921569
    %v898 = vmul.f32 %v674, 0.003921569
    %v899 = vmul.f32 %v675, 0.003921569
    %v900 = vmul.f32 %v676, 0.003921569
    %v901 = vmul.f32 %v677, 0.003921569
    %v902 = vmul.f32 %v678, 0.003921569
    %v903 = vmul.f32 %v679, 0.003921569
    %v904 = vmul.f32 %v680, 0.003921569
    %v905 = vmul.f32 %v681, 0.003921569
    %v906 = vmul.f32 %v682, 0.003921569
    %v907 = vmul.f32 %v683, 0.003921569
    %v908 = vmul.f32 %v684, 0.003921569
    %v909 = vmul.f32 %v685, 0.003921569
    %v910 = vmul.f32 %v686, 0.003921569
    %v911 = vmul.f32 %v687, 0.003921569
    %v912 = vmul.f32 %v688, 0.003921569
    %v913 = vmul.f32 %v689, 0.003921569
    %v914 = vmul.f32 %v690, 0.003921569
    %v915 = vmul.f32 %v691, 0.003921569
    %v916 = vmul.f32 %v692, 0.003921569
    %v917 = vmul.f32 %v693, 0.003921569
    %v918 = vmul.f32 %v694, 0.003921569
    %v919 = vmul.f32 %v695, 0.003921569
    %v920 = vmul.f32 %v696, 0.003921569
    %v921 = vmul.f32 %v697, 0.003921569
    %v922 = vmul.f32 %v698, 0.003921569
    %v923 = vmul.f32 %v699, 0.003921569
    %v924 = vmul.f32 %v700, 0.003921569
    %v925 = vmul.f32 %v701, 0.003921569
    %v926 = vmul.f32 %v702, 0.003921569
    %v927 = vmul.f32 %v703, 0.003921569
    %v928 = vmul.f32 %v704, 0.003921569
    %v929 = vmul.f32 %v705, 0.003921569
    %v930 = vmul.f32 %v706, 0.003921569
    %v931 = vmul.f32 %v707, 0.003921569
    %v932 = vmul.f32 %v708, 0.003921569
    %v933 = vmul.f32 %v709, 0.003921569
    %v934 = vmul.f32 %v710, 0.003921569
    %v935 = vmul.f32 %v711, 0.003921569
    %v936 = vmul.f32 %v712, 0.003921569
    %v937 = vmul.f32 %v713, 0.003921569
    %v938 = vmul.f32 %v714, 0.003921569
    %v939 = vmul.f32 %v715, 0.003921569
    %v940 = vmul.f32 %v716, 0.003921569
    %v941 = vmul.f32 %v717, 0.003921569
    %v942 = vmul.f32 %v718, 0.003921569
    %v943 = vmul.f32 %v719, 0.003921569
    %v944 = vmul.f32 %v720, 0.003921569
    %v945 = vmul.f32 %v721, 0.003921569
    %v946 = vmul.f32 %v722, 0.003921569
    %v947 = vmul.f32 %v723, 0.003921569
    %v948 = vmul.f32 %v724, 0.003921569
    %v949 = vmul.f32 %v725, 0.003921569
    %v950 = vmul.f32 %v726, 0.003921569
    %v951 = vmul.f32 %v727, 0.003921569
    %v952 = vmul.f32 %v728, 0.003921569
    %v953 = vmul.f32 %v729, 0.003921569
    %v954 = vmul.f32 %v730, 0.003921569
    %v955 = vmul.f32 %v731, 0.003921569
    %v956 = vmul.f32 %v732, 0.003921569
    %v957 = vmul.f32 %v733, 0.003921569
    %v958 = vmul.f32 %v734, 0.003921569
    %v959 = vmul.f32 %v735, 0.003921569
    %v960 = vmul.f32 %v736, 0.003921569
    %v961 = vmul.f32 %v737, 0.003921569
    %v962 = vmul.f32 %v738, 0.003921569
    %v963 = vmul.f32 %v739, 0.003921569
    %v964 = vmul.f32 %v740, 0.003921569
    %v965 = vmul.f32 %v741, 0.003921569
    %v966 = vmul.f32 %v742, 0.003921569
    %v967 = vmul.f32 %v743, 0.003921569
    %v968 = vmul.f32 %v744, 0.003921569
    %v969 = vmul.f32 %v745, 0.003921569
    %v970 = vmul.f32 %v746, 0.003921569
    %v971 = vmul.f32 %v747, 0.003921569
    %v972 = vmul.f32 %v748, 0.003921569
    %v973 = vmul.f32 %v749, 0.003921569
    %v974 = vmul.f32 %v750, 0.003921569
    %975 = vst [vmem:[#allocation5] sm:$0xff] %v751
    %976 = vst [vmem:[#allocation5 + $0x8] sm:$0xff] %v752
    %977 = vst [vmem:[#allocation5 + $0x10] sm:$0xff] %v753
    %978 = vst [vmem:[#allocation5 + $0x18] sm:$0xff] %v754
    %979 = vst [vmem:[#allocation5 + $0x20] sm:$0xff] %v755
    %980 = vst [vmem:[#allocation5 + $0x28] sm:$0xff] %v756
    %981 = vst [vmem:[#allocation5 + $0x30] sm:$0xff] %v757
    %982 = vst [vmem:[#allocation5 + $0x38] sm:$0xff] %v758
    %983 = vst [vmem:[#allocation5 + $0x40] sm:$0xff] %v759
    %984 = vst [vmem:[#allocation5 + $0x48] sm:$0xff] %v760
    %985 = vst [vmem:[#allocation5 + $0x50] sm:$0xff] %v761
    %986 = vst [vmem:[#allocation5 + $0x58] sm:$0xff] %v762
    %987 = vst [vmem:[#allocation5 + $0x60] sm:$0xff] %v763
    %988 = vst [vmem:[#allocation5 + $0x68] sm:$0xff] %v764
    %989 = vst [vmem:[#allocation5 + $0x70] sm:$0xff] %v765
    %990 = vst [vmem:[#allocation5 + $0x78] sm:$0xff] %v766
    %991 = vst [vmem:[#allocation5 + $0x80] sm:$0xff] %v767
    %992 = vst [vmem:[#allocation5 + $0x88] sm:$0xff] %v768
    %993 = vst [vmem:[#allocation5 + $0x90] sm:$0xff] %v769
    %994 = vst [vmem:[#allocation5 + $0x98] sm:$0xff] %v770
    %995 = vst [vmem:[#allocation5 + $0xa0] sm:$0xff] %v771
    %996 = vst [vmem:[#allocation5 + $0xa8] sm:$0xff] %v772
    %997 = vst [vmem:[#allocation5 + $0xb0] sm:$0xff] %v773
    %998 = vst [vmem:[#allocation5 + $0xb8] sm:$0xff] %v774
    %999 = vst [vmem:[#allocation5 + $0xc0] sm:$0xff] %v775
    %1000 = vst [vmem:[#allocation5 + $0xc8] sm:$0xff] %v776
    %1001 = vst [vmem:[#allocation5 + $0xd0] sm:$0xff] %v777
    %1002 = vst [vmem:[#allocation5 + $0xd8] sm:$0xff] %v778
    %1003 = vst [vmem:[#allocation5 + $0xe0] sm:$0xff] %v779
    %1004 = vst [vmem:[#allocation5 + $0xe8] sm:$0xff] %v780
    %1005 = vst [vmem:[#allocation5 + $0xf0] sm:$0xff] %v781
    %1006 = vst [vmem:[#allocation5 + $0xf8] sm:$0xff] %v782
    %1007 = vst [vmem:[#allocation5 + $0x100] sm:$0xff] %v783
    %1008 = vst [vmem:[#allocation5 + $0x108] sm:$0xff] %v784
    %1009 = vst [vmem:[#allocation5 + $0x110] sm:$0xff] %v785
    %1010 = vst [vmem:[#allocation5 + $0x118] sm:$0xff] %v786
    %1011 = vst [vmem:[#allocation5 + $0x120] sm:$0xff] %v787
    %1012 = vst [vmem:[#allocation5 + $0x128] sm:$0xff] %v788
    %1013 = vst [vmem:[#allocation5 + $0x130] sm:$0xff] %v789
    %1014 = vst [vmem:[#allocation5 + $0x138] sm:$0xff] %v790
    %1015 = vst [vmem:[#allocation5 + $0x140] sm:$0xff] %v791
    %1016 = vst [vmem:[#allocation5 + $0x148] sm:$0xff] %v792
    %1017 = vst [vmem:[#allocation5 + $0x150] sm:$0xff] %v793
    %1018 = vst [vmem:[#allocation5 + $0x158] sm:$0xff] %v794
    %1019 = vst [vmem:[#allocation5 + $0x160] sm:$0xff] %v795
    %1020 = vst [vmem:[#allocation5 + $0x168] sm:$0xff] %v796
    %1021 = vst [vmem:[#allocation5 + $0x170] sm:$0xff] %v797
    %1022 = vst [vmem:[#allocation5 + $0x178] sm:$0xff] %v798
    %1023 = vst [vmem:[#allocation5 + $0x180] sm:$0xff] %v799
    %1024 = vst [vmem:[#allocation5 + $0x188] sm:$0xff] %v800
    %1025 = vst [vmem:[#allocation5 + $0x190] sm:$0xff] %v801
    %1026 = vst [vmem:[#allocation5 + $0x198] sm:$0xff] %v802
    %1027 = vst [vmem:[#allocation5 + $0x1a0] sm:$0xff] %v803
    %1028 = vst [vmem:[#allocation5 + $0x1a8] sm:$0xff] %v804
    %1029 = vst [vmem:[#allocation5 + $0x1b0] sm:$0xff] %v805
    %1030 = vst [vmem:[#allocation5 + $0x1b8] sm:$0xff] %v806
    %1031 = vst [vmem:[#allocation5 + $0x1c0] sm:$0xff] %v807
    %1032 = vst [vmem:[#allocation5 + $0x1c8] sm:$0xff] %v808
    %1033 = vst [vmem:[#allocation5 + $0x1d0] sm:$0xff] %v809
    %1034 = vst [vmem:[#allocation5 + $0x1d8] sm:$0xff] %v810
    %1035 = vst [vmem:[#allocation5 + $0x1e0] sm:$0xff] %v811
    %1036 = vst [vmem:[#allocation5 + $0x1e8] sm:$0xff] %v812
    %1037 = vst [vmem:[#allocation5 + $0x1f0] sm:$0xff] %v813
    %1038 = vst [vmem:[#allocation5 + $0x1f8] sm:$0xff] %v814
    %1039 = vst [vmem:[#allocation5 + $0x200] sm:$0xff] %v815
    %1040 = vst [vmem:[#allocation5 + $0x208] sm:$0xff] %v816
    %1041 = vst [vmem:[#allocation5 + $0x210] sm:$0xff] %v817
    %1042 = vst [vmem:[#allocation5 + $0x218] sm:$0xff] %v818
    %1043 = vst [vmem:[#allocation5 + $0x220] sm:$0xff] %v819
    %1044 = vst [vmem:[#allocation5 + $0x228] sm:$0xff] %v820
    %1045 = vst [vmem:[#allocation5 + $0x230] sm:$0xff] %v821
    %1046 = vst [vmem:[#allocation5 + $0x238] sm:$0xff] %v822
    %1047 = vst [vmem:[#allocation5 + $0x240] sm:$0xff] %v823
    %1048 = vst [vmem:[#allocation5 + $0x248] sm:$0xff] %v824
    %1049 = vst [vmem:[#allocation5 + $0x250] sm:$0xff] %v825
    %1050 = vst [vmem:[#allocation5 + $0x258] sm:$0xff] %v826
    %1051 = vst [vmem:[#allocation5 + $0x260] sm:$0xff] %v827
    %1052 = vst [vmem:[#allocation5 + $0x268] sm:$0xff] %v828
    %1053 = vst [vmem:[#allocation5 + $0x270] sm:$0xff] %v829
    %1054 = vst [vmem:[#allocation5 + $0x278] sm:$0xff] %v830
    %1055 = vst [vmem:[#allocation5 + $0x280] sm:$0xff] %v831
    %1056 = vst [vmem:[#allocation5 + $0x288] sm:$0xff] %v832
    %1057 = vst [vmem:[#allocation5 + $0x290] sm:$0xff] %v833
    %1058 = vst [vmem:[#allocation5 + $0x298] sm:$0xff] %v834
    %1059 = vst [vmem:[#allocation5 + $0x2a0] sm:$0xff] %v835
    %1060 = vst [vmem:[#allocation5 + $0x2a8] sm:$0xff] %v836
    %1061 = vst [vmem:[#allocation5 + $0x2b0] sm:$0xff] %v837
    %1062 = vst [vmem:[#allocation5 + $0x2b8] sm:$0xff] %v838
    %1063 = vst [vmem:[#allocation5 + $0x2c0] sm:$0xff] %v839
    %1064 = vst [vmem:[#allocation5 + $0x2c8] sm:$0xff] %v840
    %1065 = vst [vmem:[#allocation5 + $0x2d0] sm:$0xff] %v841
    %1066 = vst [vmem:[#allocation5 + $0x2d8] sm:$0xff] %v842
    %1067 = vst [vmem:[#allocation5 + $0x2e0] sm:$0xff] %v843
    %1068 = vst [vmem:[#allocation5 + $0x2e8] sm:$0xff] %v844
    %1069 = vst [vmem:[#allocation5 + $0x2f0] sm:$0xff] %v845
    %1070 = vst [vmem:[#allocation5 + $0x2f8] sm:$0xff] %v846
    %1071 = vst [vmem:[#allocation5 + $0x300] sm:$0xff] %v847
    %1072 = vst [vmem:[#allocation5 + $0x308] sm:$0xff] %v848
    %1073 = vst [vmem:[#allocation5 + $0x310] sm:$0xff] %v849
    %1074 = vst [vmem:[#allocation5 + $0x318] sm:$0xff] %v850
    %1075 = vst [vmem:[#allocation5 + $0x320] sm:$0xff] %v851
    %1076 = vst [vmem:[#allocation5 + $0x328] sm:$0xff] %v852
    %1077 = vst [vmem:[#allocation5 + $0x330] sm:$0xff] %v853
    %1078 = vst [vmem:[#allocation5 + $0x338] sm:$0xff] %v854
    %1079 = vst [vmem:[#allocation5 + $0x340] sm:$0xff] %v855
    %1080 = vst [vmem:[#allocation5 + $0x348] sm:$0xff] %v856
    %1081 = vst [vmem:[#allocation5 + $0x350] sm:$0xff] %v857
    %1082 = vst [vmem:[#allocation5 + $0x358] sm:$0xff] %v858
    %1083 = vst [vmem:[#allocation5 + $0x360] sm:$0xff] %v859
    %1084 = vst [vmem:[#allocation5 + $0x368] sm:$0xff] %v860
    %1085 = vst [vmem:[#allocation5 + $0x370] sm:$0xff] %v861
    %1086 = vst [vmem:[#allocation5 + $0x378] sm:$0xff] %v862
    %1087 = vst [vmem:[#allocation5 + $0x380] sm:$0xff] %v863
    %1088 = vst [vmem:[#allocation5 + $0x388] sm:$0xff] %v864
    %1089 = vst [vmem:[#allocation5 + $0x390] sm:$0xff] %v865
    %1090 = vst [vmem:[#allocation5 + $0x398] sm:$0xff] %v866
    %1091 = vst [vmem:[#allocation5 + $0x3a0] sm:$0xff] %v867
    %1092 = vst [vmem:[#allocation5 + $0x3a8] sm:$0xff] %v868
    %1093 = vst [vmem:[#allocation5 + $0x3b0] sm:$0xff] %v869
    %1094 = vst [vmem:[#allocation5 + $0x3b8] sm:$0xff] %v870
    %1095 = vst [vmem:[#allocation5 + $0x3c0] sm:$0xff] %v871
    %1096 = vst [vmem:[#allocation5 + $0x3c8] sm:$0xff] %v872
    %1097 = vst [vmem:[#allocation5 + $0x3d0] sm:$0xff] %v873
    %1098 = vst [vmem:[#allocation5 + $0x3d8] sm:$0xff] %v874
    %1099 = vst [vmem:[#allocation5 + $0x3e0] sm:$0xff] %v875
    %1100 = vst [vmem:[#allocation5 + $0x3e8] sm:$0xff] %v876
    %1101 = vst [vmem:[#allocation5 + $0x3f0] sm:$0xff] %v877
    %1102 = vst [vmem:[#allocation5 + $0x3f8] sm:$0xff] %v878
    %1103 = vst [vmem:[#allocation5 + $0x400] sm:$0xff] %v879
    %1104 = vst [vmem:[#allocation5 + $0x408] sm:$0xff] %v880
    %1105 = vst [vmem:[#allocation5 + $0x410] sm:$0xff] %v881
    %1106 = vst [vmem:[#allocation5 + $0x418] sm:$0xff] %v882
    %1107 = vst [vmem:[#allocation5 + $0x420] sm:$0xff] %v883
    %1108 = vst [vmem:[#allocation5 + $0x428] sm:$0xff] %v884
    %1109 = vst [vmem:[#allocation5 + $0x430] sm:$0xff] %v885
    %1110 = vst [vmem:[#allocation5 + $0x438] sm:$0xff] %v886
    %1111 = vst [vmem:[#allocation5 + $0x440] sm:$0xff] %v887
    %1112 = vst [vmem:[#allocation5 + $0x448] sm:$0xff] %v888
    %1113 = vst [vmem:[#allocation5 + $0x450] sm:$0xff] %v889
    %1114 = vst [vmem:[#allocation5 + $0x458] sm:$0xff] %v890
    %1115 = vst [vmem:[#allocation5 + $0x460] sm:$0xff] %v891
    %1116 = vst [vmem:[#allocation5 + $0x468] sm:$0xff] %v892
    %1117 = vst [vmem:[#allocation5 + $0x470] sm:$0xff] %v893
    %1118 = vst [vmem:[#allocation5 + $0x478] sm:$0xff] %v894
    %1119 = vst [vmem:[#allocation5 + $0x480] sm:$0xff] %v895
    %1120 = vst [vmem:[#allocation5 + $0x488] sm:$0xff] %v896
    %1121 = vst [vmem:[#allocation5 + $0x490] sm:$0xff] %v897
    %1122 = vst [vmem:[#allocation5 + $0x498] sm:$0xff] %v898
    %1123 = vst [vmem:[#allocation5 + $0x4a0] sm:$0xff] %v899
    %1124 = vst [vmem:[#allocation5 + $0x4a8] sm:$0xff] %v900
    %1125 = vst [vmem:[#allocation5 + $0x4b0] sm:$0xff] %v901
    %1126 = vst [vmem:[#allocation5 + $0x4b8] sm:$0xff] %v902
    %1127 = vst [vmem:[#allocation5 + $0x4c0] sm:$0xff] %v903
    %1128 = vst [vmem:[#allocation5 + $0x4c8] sm:$0xff] %v904
    %1129 = vst [vmem:[#allocation5 + $0x4d0] sm:$0xff] %v905
    %1130 = vst [vmem:[#allocation5 + $0x4d8] sm:$0xff] %v906
    %1131 = vst [vmem:[#allocation5 + $0x4e0] sm:$0xff] %v907
    %1132 = vst [vmem:[#allocation5 + $0x4e8] sm:$0xff] %v908
    %1133 = vst [vmem:[#allocation5 + $0x4f0] sm:$0xff] %v909
    %1134 = vst [vmem:[#allocation5 + $0x4f8] sm:$0xff] %v910
    %1135 = vst [vmem:[#allocation5 + $0x500] sm:$0xff] %v911
    %1136 = vst [vmem:[#allocation5 + $0x508] sm:$0xff] %v912
    %1137 = vst [vmem:[#allocation5 + $0x510] sm:$0xff] %v913
    %1138 = vst [vmem:[#allocation5 + $0x518] sm:$0xff] %v914
    %1139 = vst [vmem:[#allocation5 + $0x520] sm:$0xff] %v915
    %1140 = vst [vmem:[#allocation5 + $0x528] sm:$0xff] %v916
    %1141 = vst [vmem:[#allocation5 + $0x530] sm:$0xff] %v917
    %1142 = vst [vmem:[#allocation5 + $0x538] sm:$0xff] %v918
    %1143 = vst [vmem:[#allocation5 + $0x540] sm:$0xff] %v919
    %1144 = vst [vmem:[#allocation5 + $0x548] sm:$0xff] %v920
    %1145 = vst [vmem:[#allocation5 + $0x550] sm:$0xff] %v921
    %1146 = vst [vmem:[#allocation5 + $0x558] sm:$0xff] %v922
    %1147 = vst [vmem:[#allocation5 + $0x560] sm:$0xff] %v923
    %1148 = vst [vmem:[#allocation5 + $0x568] sm:$0xff] %v924
    %1149 = vst [vmem:[#allocation5 + $0x570] sm:$0xff] %v925
    %1150 = vst [vmem:[#allocation5 + $0x578] sm:$0xff] %v926
    %1151 = vst [vmem:[#allocation5 + $0x580] sm:$0xff] %v927
    %1152 = vst [vmem:[#allocation5 + $0x588] sm:$0xff] %v928
    %1153 = vst [vmem:[#allocation5 + $0x590] sm:$0xff] %v929
    %1154 = vst [vmem:[#allocation5 + $0x598] sm:$0xff] %v930
    %1155 = vst [vmem:[#allocation5 + $0x5a0] sm:$0xff] %v931
    %1156 = vst [vmem:[#allocation5 + $0x5a8] sm:$0xff] %v932
    %1157 = vst [vmem:[#allocation5 + $0x5b0] sm:$0xff] %v933
    %1158 = vst [vmem:[#allocation5 + $0x5b8] sm:$0xff] %v934
    %1159 = vst [vmem:[#allocation5 + $0x5c0] sm:$0xff] %v935
    %1160 = vst [vmem:[#allocation5 + $0x5c8] sm:$0xff] %v936
    %1161 = vst [vmem:[#allocation5 + $0x5d0] sm:$0xff] %v937
    %1162 = vst [vmem:[#allocation5 + $0x5d8] sm:$0xff] %v938
    %1163 = vst [vmem:[#allocation5 + $0x5e0] sm:$0xff] %v939
    %1164 = vst [vmem:[#allocation5 + $0x5e8] sm:$0xff] %v940
    %1165 = vst [vmem:[#allocation5 + $0x5f0] sm:$0xff] %v941
    %1166 = vst [vmem:[#allocation5 + $0x5f8] sm:$0xff] %v942
    %1167 = vst [vmem:[#allocation5 + $0x600] sm:$0xff] %v943
    %1168 = vst [vmem:[#allocation5 + $0x608] sm:$0xff] %v944
    %1169 = vst [vmem:[#allocation5 + $0x610] sm:$0xff] %v945
    %1170 = vst [vmem:[#allocation5 + $0x618] sm:$0xff] %v946
    %1171 = vst [vmem:[#allocation5 + $0x620] sm:$0xff] %v947
    %1172 = vst [vmem:[#allocation5 + $0x628] sm:$0xff] %v948
    %1173 = vst [vmem:[#allocation5 + $0x630] sm:$0xff] %v949
    %1174 = vst [vmem:[#allocation5 + $0x638] sm:$0xff] %v950
    %1175 = vst [vmem:[#allocation5 + $0x640] sm:$0xff] %v951
    %1176 = vst [vmem:[#allocation5 + $0x648] sm:$0xff] %v952
    %1177 = vst [vmem:[#allocation5 + $0x650] sm:$0xff] %v953
    %1178 = vst [vmem:[#allocation5 + $0x658] sm:$0xff] %v954
    %1179 = vst [vmem:[#allocation5 + $0x660] sm:$0xff] %v955
    %1180 = vst [vmem:[#allocation5 + $0x668] sm:$0xff] %v956
    %1181 = vst [vmem:[#allocation5 + $0x670] sm:$0xff] %v957
    %1182 = vst [vmem:[#allocation5 + $0x678] sm:$0xff] %v958
    %1183 = vst [vmem:[#allocation5 + $0x680] sm:$0xff] %v959
    %1184 = vst [vmem:[#allocation5 + $0x688] sm:$0xff] %v960
    %1185 = vst [vmem:[#allocation5 + $0x690] sm:$0xff] %v961
    %1186 = vst [vmem:[#allocation5 + $0x698] sm:$0xff] %v962
    %1187 = vst [vmem:[#allocation5 + $0x6a0] sm:$0xff] %v963
    %1188 = vst [vmem:[#allocation5 + $0x6a8] sm:$0xff] %v964
    %1189 = vst [vmem:[#allocation5 + $0x6b0] sm:$0xff] %v965
    %1190 = vst [vmem:[#allocation5 + $0x6b8] sm:$0xff] %v966
    %1191 = vst [vmem:[#allocation5 + $0x6c0] sm:$0xff] %v967
    %1192 = vst [vmem:[#allocation5 + $0x6c8] sm:$0xff] %v968
    %1193 = vst [vmem:[#allocation5 + $0x6d0] sm:$0xff] %v969
    %1194 = vst [vmem:[#allocation5 + $0x6d8] sm:$0xff] %v970
    %1195 = vst [vmem:[#allocation5 + $0x6e0] sm:$0x1] %v971
    %1196 = vst [vmem:[#allocation5 + $0x6e8] sm:$0x1] %v972
    %1197 = vst [vmem:[#allocation5 + $0x6f0] sm:$0x1] %v973
    %1198 = vst [vmem:[#allocation5 + $0x6f8] sm:$0x1] %v974
    // Predicated region
    $region10: #{tpu_custom_call.1} parent=1 // pred_check
      _
    $region11: #{tpu_custom_call.1} parent=1 // pred_check_branch
      %1200 = sbr.rel (0) target = $region13
    $region12: #{tpu_custom_call.1} parent=1 // pred_region
      %s1202 = ssub.s32 28672, 28672
      %1203 = vsyncadd [#allocation4], %s1202
      %s1204 = sshll.u32 [#allocation5], 4
      %s1205 = int_to_ptr.vmem [resolvable:$true] %s1204
      %1210 = dma.vmem_to_hbm [thread:$0]  %s1205, 28672, %s1, [#allocation4], 512, 512, 32
    $region13: #{tpu_custom_call.1} parent=1 // pred_fallthru
      _
    // Predicated region
    $region14: #{tpu_custom_call.1} parent=1 // pred_check
      _
    $region15: #{tpu_custom_call.1} parent=1 // pred_check_branch
      %1212 = sbr.rel (0) target = $region17
    $region16: #{tpu_custom_call.1} parent=1 // pred_region
      %1213 = dma.done [#allocation4], 28672
    $region17: #{tpu_custom_call.1} parent=1 // pred_fallthru
      _
    %1214 = vsyncpa [#allocation3], 1
    %1215 = vsyncpa [#allocation4], 1

</llo_original>
